<compile_context>
chip_gen: v7x
topology: tpu7x:2x2x1
jax: 0.10.0
libtpu: 0.0.40
codegen_flags: <defaults>
</compile_context>

<pallas_src>
import functools

import jax
import jax.numpy as jnp
from jax.experimental import pallas as pl
from jax.experimental.pallas import tpu as pltpu


def _round_up(x, m):
    return (x + m - 1) // m * m


def _stacked_gru_kernel(x0_ref, h0_ref, wc_ref, whn_ref, bc_ref, bhn_ref,
                        hout_ref, xh_sc, *, hpad, din_max):
    """One layer of the stacked GRU; layer index = grid axis 1.

    x0_ref:   (Bt, Dmax)                 layer-0 input (padded)
    h0_ref:   (1, Bt, Hpad)              this layer's initial hidden
    wc_ref:   (1, Dmax + Hpad, 3*Hpad)   fused [W_ih; W_hh(r,z only)] (pre-T)
    whn_ref:  (1, Hpad, Hpad)            W_hn (pre-T)
    bc_ref:   (1, 1, 3*Hpad)             folded biases (r,z: b_ih+b_hh; n: b_in)
    bhn_ref:  (1, 1, Hpad)               b_hn
    hout_ref: (1, Bt, Hpad)              new hidden for this layer
    xh_sc:    (Bt, Dmax + Hpad) VMEM     fused [x | h] buffer, carried across layers
    """
    l = pl.program_id(1)

    # Layer 0: load the external input into the x-half of the fused buffer.
    @pl.when(l == 0)
    def _():
        xh_sc[:, :din_max] = x0_ref[...]

    # Every layer: load this layer's initial hidden into the h-half.
    h = h0_ref[0]
    xh_sc[:, din_max:] = h
    xh = xh_sc[...]

    # Fused matmul: r/z columns see (W_ih; W_hh); n columns see (W_in; 0).
    g = jnp.dot(xh, wc_ref[0], preferred_element_type=jnp.float32) + bc_ref[0]
    # n-gate hidden contribution must stay separate: n = tanh(g_n + r * ghn).
    ghn = jnp.dot(h, whn_ref[0], preferred_element_type=jnp.float32) + bhn_ref[0]

    r = jax.nn.sigmoid(g[:, 0:hpad])
    z = jax.nn.sigmoid(g[:, hpad:2 * hpad])
    n = jnp.tanh(g[:, 2 * hpad:3 * hpad] + r * ghn)
    h_new = (1.0 - z) * n + z * h

    hout_ref[0] = h_new.astype(hout_ref.dtype)

    # Carry: next layer's input is this layer's output.  Lanes [Hpad, Dmax)
    # may hold stale layer-0 input, but the corresponding weight rows of all
    # layers > 0 are zero-padded, so they contribute nothing.
    @pl.when(l + 1 < pl.num_programs(1))
    def _():
        xh_sc[:, :hpad] = h_new


@functools.partial(jax.jit, static_argnames=("hpad", "din_max"))
def _stacked_gru_apply(inp, hidden, wc, whn, bc, bhn, *, hpad, din_max):
    B, d_in = inp.shape
    L, _, H = hidden.shape
    bpad = _round_up(max(B, 8), 8)
    bt = 256 if bpad % 256 == 0 else bpad          # batch tile (1 block here)
    nb = bpad // bt

    # Zero-pad batch to a sublane multiple and features to 128-lane multiples.
    x0p = jnp.zeros((bpad, din_max), jnp.float32).at[:B, :d_in].set(
        inp.astype(jnp.float32))
    hp = jnp.zeros((L, bpad, hpad), jnp.float32).at[:, :B, :H].set(
        hidden.astype(jnp.float32))

    kernel = functools.partial(_stacked_gru_kernel, hpad=hpad, din_max=din_max)

    h_out = pl.pallas_call(
        kernel,
        out_shape=jax.ShapeDtypeStruct((L, bpad, hpad), jnp.float32),
        grid_spec=pltpu.PrefetchScalarGridSpec(
            num_scalar_prefetch=0,
            grid=(nb, L),
            in_specs=[
                pl.BlockSpec((bt, din_max), lambda b, l: (b, 0)),
                pl.BlockSpec((1, bt, hpad), lambda b, l: (l, b, 0)),
                pl.BlockSpec((1, din_max + hpad, 3 * hpad),
                             lambda b, l: (l, 0, 0)),
                pl.BlockSpec((1, hpad, hpad), lambda b, l: (l, 0, 0)),
                pl.BlockSpec((1, 1, 3 * hpad), lambda b, l: (l, 0, 0)),
                pl.BlockSpec((1, 1, hpad), lambda b, l: (l, 0, 0)),
            ],
            out_specs=pl.BlockSpec((1, bt, hpad), lambda b, l: (l, b, 0)),
            scratch_shapes=[pltpu.VMEM((bt, din_max + hpad), jnp.float32)],
        ),
        # Update the hidden-state buffer in place (hp is only consumed here).
        input_output_aliases={1: 0},
        compiler_params=pltpu.CompilerParams(
            dimension_semantics=("parallel", "arbitrary")),
    )(x0p, hp, wc, whn, bc, bhn)

    h_1 = h_out[:, :B, :H]
    return h_1[-1], h_1


class StackedGRUPallas:
    """Mirror of undreamt StackedGRU.forward (inference: dropout = identity)."""

    def __init__(self, input_size, hidden_size, layers, dropout, key):
        self.input_size = input_size
        self.hidden_size = hidden_size
        self.num_layers = layers
        self.dropout = dropout  # identity at inference time
        H = hidden_size
        self.hpad = _round_up(H, 128)
        self.din_max = max(_round_up(input_size, 128), self.hpad)

        bound = 1.0 / (H ** 0.5)
        self.raw_params = []          # PyTorch-layout params (for reference)
        wc_l, whn_l, bc_l, bhn_l = [], [], [], []
        d_in = input_size
        for _ in range(layers):
            key, k1, k2, k3, k4 = jax.random.split(key, 5)
            # PyTorch GRUCell params: weight_ih (3H, d_in), weight_hh (3H, H),
            # bias_ih (3H,), bias_hh (3H,); gate order r, z, n.
            w_ih = jax.random.uniform(k1, (3 * H, d_in), jnp.float32, -bound, bound)
            w_hh = jax.random.uniform(k2, (3 * H, H), jnp.float32, -bound, bound)
            b_ih = jax.random.uniform(k3, (3 * H,), jnp.float32, -bound, bound)
            b_hh = jax.random.uniform(k4, (3 * H,), jnp.float32, -bound, bound)
            self.raw_params.append((w_ih, w_hh, b_ih, b_hh))

            # --- pack into the fused, lane-padded layout ---
            wc = jnp.zeros((self.din_max + self.hpad, 3 * self.hpad), jnp.float32)
            bc = jnp.zeros((1, 3 * self.hpad), jnp.float32)
            whn = jnp.zeros((self.hpad, self.hpad), jnp.float32)
            bhn = jnp.zeros((1, self.hpad), jnp.float32)

            # input weights for all three gates
            for g in range(3):
                col = g * self.hpad
                wc = wc.at[:d_in, col:col + H].set(w_ih[g * H:(g + 1) * H, :].T)
            # hidden weights for r, z go into the fused matmul
            for g in range(2):
                col = g * self.hpad
                wc = wc.at[self.din_max:self.din_max + H, col:col + H].set(
                    w_hh[g * H:(g + 1) * H, :].T)
            # folded biases: r,z get b_ih+b_hh; n gets b_ih only
            bc = bc.at[0, 0:H].set(b_ih[0:H] + b_hh[0:H])
            bc = bc.at[0, self.hpad:self.hpad + H].set(b_ih[H:2 * H] + b_hh[H:2 * H])
            bc = bc.at[0, 2 * self.hpad:2 * self.hpad + H].set(b_ih[2 * H:3 * H])
            # n-gate hidden contribution stays separate: r * (W_hn h + b_hn)
            whn = whn.at[:H, :H].set(w_hh[2 * H:3 * H, :].T)
            bhn = bhn.at[0, :H].set(b_hh[2 * H:3 * H])

            wc_l.append(wc)
            whn_l.append(whn)
            bc_l.append(bc)
            bhn_l.append(bhn)
            d_in = hidden_size

        self.wc = jnp.stack(wc_l)      # (L, Dmax + Hpad, 3*Hpad)
        self.whn = jnp.stack(whn_l)    # (L, Hpad, Hpad)
        self.bc = jnp.stack(bc_l)      # (L, 1, 3*Hpad)
        self.bhn = jnp.stack(bhn_l)    # (L, 1, Hpad)

    def __call__(self, inp, hidden):
        """inp: (B, input_size); hidden: (num_layers, B, H).
        Returns (output (B, H), h_1 (num_layers, B, H))."""
        return _stacked_gru_apply(inp, hidden, self.wc, self.whn, self.bc,
                                  self.bhn, hpad=self.hpad, din_max=self.din_max)


def _gru_cell_ref(x, h, w_ih, w_hh, b_ih, b_hh):
    """Pure-JAX PyTorch nn.GRUCell reference."""
    H = h.shape[-1]
    gi = x @ w_ih.T + b_ih
    gh = h @ w_hh.T + b_hh
    r = jax.nn.sigmoid(gi[:, :H] + gh[:, :H])
    z = jax.nn.sigmoid(gi[:, H:2 * H] + gh[:, H:2 * H])
    n = jnp.tanh(gi[:, 2 * H:] + r * gh[:, 2 * H:])
    return (1.0 - z) * n + z * h


if __name__ == "__main__":
    B = 2
    INPUT_SIZE = 48   # decoder input (embedding + context) != hidden size
    HIDDEN = 32
    LAYERS = 3
    DROPOUT = 0.0

    key = jax.random.PRNGKey(0)
    kp, kx, kh = jax.random.split(key, 3)

    model = StackedGRUPallas(INPUT_SIZE, HIDDEN, LAYERS, DROPOUT, kp)

    x = jax.random.normal(kx, (B, INPUT_SIZE), jnp.float32)
    hidden = jax.random.normal(kh, (LAYERS, B, HIDDEN), jnp.float32)

    out, h_1 = model(x, hidden)
    out = jax.block_until_ready(out)
    h_1 = jax.block_until_ready(h_1)

    # sanity check vs pure-JAX reference (dropout = identity at inference)
    x_ref = x
    h_refs = []
    for i, (w_ih, w_hh, b_ih, b_hh) in enumerate(model.raw_params):
        h_i = _gru_cell_ref(x_ref, hidden[i], w_ih, w_hh, b_ih, b_hh)
        x_ref = h_i
        h_refs.append(h_i)
    h_ref = jnp.stack(h_refs)

    assert out.shape == (B, HIDDEN)
    assert h_1.shape == (LAYERS, B, HIDDEN)
    assert jnp.allclose(out, h_ref[-1], atol=2e-5, rtol=1e-5), "output mismatch"
    assert jnp.allclose(h_1, h_ref, atol=2e-5, rtol=1e-5), "hidden mismatch"

    print("KERNEL_OK")
</pallas_src>

<mosaic_0001>
module attributes {stable_mosaic.version = 11 : i64} {
  func.func @_stacked_gru_kernel(%arg0: i32, %arg1: i32, %arg2: memref<8x128xf32, #tpu.memory_space<vmem>>, %arg3: memref<1x8x128xf32, #tpu.memory_space<vmem>>, %arg4: memref<1x256x384xf32, #tpu.memory_space<vmem>>, %arg5: memref<1x128x128xf32, #tpu.memory_space<vmem>>, %arg6: memref<1x1x384xf32, #tpu.memory_space<vmem>>, %arg7: memref<1x1x128xf32, #tpu.memory_space<vmem>>, %arg8: memref<1x8x128xf32, #tpu.memory_space<vmem>>, %arg9: memref<8x256xf32, #tpu.memory_space<vmem>>) attributes {dimension_semantics = [#tpu.dimension_semantics<parallel>, #tpu.dimension_semantics<arbitrary>], iteration_bounds = array<i64: 1, 3>, scalar_prefetch = 0 : i64, scratch_operands = 1 : i64, tpu.core_type = #tpu.core_type<tc>, window_params = [{transform_indices = @transform_0, window_bounds = array<i64: 8, 128>}, {transform_indices = @transform_1, window_bounds = array<i64: 1, 8, 128>}, {transform_indices = @transform_2, window_bounds = array<i64: 1, 256, 384>}, {transform_indices = @transform_3, window_bounds = array<i64: 1, 128, 128>}, {transform_indices = @transform_4, window_bounds = array<i64: 1, 1, 384>}, {transform_indices = @transform_5, window_bounds = array<i64: 1, 1, 128>}, {transform_indices = @transform_6, window_bounds = array<i64: 1, 8, 128>}]} {
    %c0_i32 = arith.constant 0 : i32
    %0 = arith.cmpi eq, %arg1, %c0_i32 : i32
    %1 = arith.extui %0 : i1 to i32
    %c0_i32_0 = arith.constant 0 : i32
    %2 = arith.cmpi ne, %1, %c0_i32_0 : i32
    scf.if %2 {
      %c0_26 = arith.constant 0 : index
      %c0_27 = arith.constant 0 : index
      %49 = vector.load %arg2[%c0_26, %c0_27] : memref<8x128xf32, #tpu.memory_space<vmem>>, vector<8x128xf32>
      %c0_28 = arith.constant 0 : index
      %c0_29 = arith.constant 0 : index
      %50 = vector.load %arg9[%c0_28, %c0_29] : memref<8x256xf32, #tpu.memory_space<vmem>>, vector<8x128xf32>
      tpu.vector_store %arg9[%c0_28, %c0_29], %49 {strides = array<i32>} : memref<8x256xf32, #tpu.memory_space<vmem>>, vector<8x128xf32>,
    } else {
    }
    %c0 = arith.constant 0 : index
    %c0_1 = arith.constant 0 : index
    %c0_2 = arith.constant 0 : index
    %3 = vector.load %arg3[%c0, %c0_1, %c0_2] : memref<1x8x128xf32, #tpu.memory_space<vmem>>, vector<1x8x128xf32>
    %4 = vector.shape_cast %3 : vector<1x8x128xf32> to vector<8x128xf32>
    %c0_3 = arith.constant 0 : index
    %c128 = arith.constant 128 : index
    %5 = vector.load %arg9[%c0_3, %c128] : memref<8x256xf32, #tpu.memory_space<vmem>>, vector<8x128xf32>
    tpu.vector_store %arg9[%c0_3, %c128], %4 {strides = array<i32>} : memref<8x256xf32, #tpu.memory_space<vmem>>, vector<8x128xf32>,
    %c0_4 = arith.constant 0 : index
    %c0_5 = arith.constant 0 : index
    %6 = vector.load %arg9[%c0_4, %c0_5] : memref<8x256xf32, #tpu.memory_space<vmem>>, vector<8x256xf32>
    %c0_6 = arith.constant 0 : index
    %c0_7 = arith.constant 0 : index
    %c0_8 = arith.constant 0 : index
    %7 = vector.load %arg4[%c0_6, %c0_7, %c0_8] : memref<1x256x384xf32, #tpu.memory_space<vmem>>, vector<1x256x384xf32>
    %8 = vector.shape_cast %7 : vector<1x256x384xf32> to vector<256x384xf32>
    %cst = arith.constant dense<0.000000e+00> : vector<8x384xf32>
    %9 = tpu.matmul %6, %8, %cst {dimension_numbers = #tpu.dot_dimension_numbers<[1], [0], [0], [1], [0, 0, 1, 1], [], []>} : vector<8x256xf32>, vector<256x384xf32>, vector<8x384xf32> -> vector<8x384xf32>
    %c0_9 = arith.constant 0 : index
    %c0_10 = arith.constant 0 : index
    %c0_11 = arith.constant 0 : index
    %10 = vector.load %arg6[%c0_9, %c0_10, %c0_11] : memref<1x1x384xf32, #tpu.memory_space<vmem>>, vector<1x1x384xf32>
    %11 = vector.shape_cast %10 : vector<1x1x384xf32> to vector<1x384xf32>
    %12 = vector.broadcast %11 : vector<1x384xf32> to vector<8x384xf32>
    %13 = arith.addf %9, %12 : vector<8x384xf32>
    %c0_12 = arith.constant 0 : index
    %c0_13 = arith.constant 0 : index
    %c0_14 = arith.constant 0 : index
    %14 = vector.load %arg5[%c0_12, %c0_13, %c0_14] : memref<1x128x128xf32, #tpu.memory_space<vmem>>, vector<1x128x128xf32>
    %15 = vector.shape_cast %14 : vector<1x128x128xf32> to vector<128x128xf32>
    %cst_15 = arith.constant dense<0.000000e+00> : vector<8x128xf32>
    %16 = tpu.matmul %4, %15, %cst_15 {dimension_numbers = #tpu.dot_dimension_numbers<[1], [0], [0], [1], [0, 0, 1, 1], [], []>} : vector<8x128xf32>, vector<128x128xf32>, vector<8x128xf32> -> vector<8x128xf32>
    %c0_16 = arith.constant 0 : index
    %c0_17 = arith.constant 0 : index
    %c0_18 = arith.constant 0 : index
    %17 = vector.load %arg7[%c0_16, %c0_17, %c0_18] : memref<1x1x128xf32, #tpu.memory_space<vmem>>, vector<1x1x128xf32>
    %18 = vector.shape_cast %17 : vector<1x1x128xf32> to vector<1x128xf32>
    %19 = vector.broadcast %18 : vector<1x128xf32> to vector<8x128xf32>
    %20 = arith.addf %16, %19 : vector<8x128xf32>
    %21 = vector.extract_strided_slice %13 {offsets = [0, 0], sizes = [8, 128], strides = [1, 1]} : vector<8x384xf32> to vector<8x128xf32>
    %22 = arith.negf %21 : vector<8x128xf32>
    %23 = math.exp %22 : vector<8x128xf32>
    %cst_19 = arith.constant 1.000000e+00 : f32
    %24 = vector.broadcast %cst_19 : f32 to vector<8x128xf32>
    %25 = arith.addf %24, %23 : vector<8x128xf32>
    %26 = arith.divf %24, %25 : vector<8x128xf32>
    %27 = vector.extract_strided_slice %13 {offsets = [0, 128], sizes = [8, 128], strides = [1, 1]} : vector<8x384xf32> to vector<8x128xf32>
    %28 = arith.negf %27 : vector<8x128xf32>
    %29 = math.exp %28 : vector<8x128xf32>
    %cst_20 = arith.constant 1.000000e+00 : f32
    %30 = vector.broadcast %cst_20 : f32 to vector<8x128xf32>
    %31 = arith.addf %30, %29 : vector<8x128xf32>
    %32 = arith.divf %30, %31 : vector<8x128xf32>
    %33 = vector.extract_strided_slice %13 {offsets = [0, 256], sizes = [8, 128], strides = [1, 1]} : vector<8x384xf32> to vector<8x128xf32>
    %34 = arith.mulf %26, %20 : vector<8x128xf32>
    %35 = arith.addf %33, %34 : vector<8x128xf32>
    %36 = math.tanh %35 : vector<8x128xf32>
    %cst_21 = arith.constant 1.000000e+00 : f32
    %37 = vector.broadcast %cst_21 : f32 to vector<8x128xf32>
    %38 = arith.subf %37, %32 : vector<8x128xf32>
    %39 = arith.mulf %38, %36 : vector<8x128xf32>
    %40 = arith.mulf %32, %4 : vector<8x128xf32>
    %41 = arith.addf %39, %40 : vector<8x128xf32>
    %c0_22 = arith.constant 0 : index
    %c0_23 = arith.constant 0 : index
    %c0_24 = arith.constant 0 : index
    %42 = vector.load %arg8[%c0_22, %c0_23, %c0_24] : memref<1x8x128xf32, #tpu.memory_space<vmem>>, vector<1x8x128xf32>
    %43 = vector.shape_cast %42 : vector<1x8x128xf32> to vector<8x128xf32>
    %44 = vector.shape_cast %41 : vector<8x128xf32> to vector<1x8x128xf32>
    tpu.vector_store %arg8[%c0_22, %c0_23, %c0_24], %44 {strides = array<i32>} : memref<1x8x128xf32, #tpu.memory_space<vmem>>, vector<1x8x128xf32>,
    %c1_i32 = arith.constant 1 : i32
    %45 = arith.addi %arg1, %c1_i32 : i32
    %c3_i32 = arith.constant 3 : i32
    %46 = arith.cmpi slt, %45, %c3_i32 : i32
    %47 = arith.extui %46 : i1 to i32
    %c0_i32_25 = arith.constant 0 : i32
    %48 = arith.cmpi ne, %47, %c0_i32_25 : i32
    scf.if %48 {
      %c0_26 = arith.constant 0 : index
      %c0_27 = arith.constant 0 : index
      %49 = vector.load %arg9[%c0_26, %c0_27] : memref<8x256xf32, #tpu.memory_space<vmem>>, vector<8x128xf32>
      tpu.vector_store %arg9[%c0_26, %c0_27], %41 {strides = array<i32>} : memref<8x256xf32, #tpu.memory_space<vmem>>, vector<8x128xf32>,
    } else {
    }
    return
  }
  func.func @transform_0(%arg0: i32, %arg1: i32) -> (i32, i32) {
    %c0_i32 = arith.constant 0 : i32
    %c0_i32_0 = arith.constant 0 : i32
    return %arg0, %c0_i32 : i32, i32
  }
  func.func @transform_1(%arg0: i32, %arg1: i32) -> (i32, i32, i32) {
    %c0_i32 = arith.constant 0 : i32
    %c0_i32_0 = arith.constant 0 : i32
    return %arg1, %arg0, %c0_i32 : i32, i32, i32
  }
  func.func @transform_2(%arg0: i32, %arg1: i32) -> (i32, i32, i32) {
    %c0_i32 = arith.constant 0 : i32
    %c0_i32_0 = arith.constant 0 : i32
    %c0_i32_1 = arith.constant 0 : i32
    return %arg1, %c0_i32, %c0_i32_0 : i32, i32, i32
  }
  func.func @transform_3(%arg0: i32, %arg1: i32) -> (i32, i32, i32) {
    %c0_i32 = arith.constant 0 : i32
    %c0_i32_0 = arith.constant 0 : i32
    %c0_i32_1 = arith.constant 0 : i32
    return %arg1, %c0_i32, %c0_i32_0 : i32, i32, i32
  }
  func.func @transform_4(%arg0: i32, %arg1: i32) -> (i32, i32, i32) {
    %c0_i32 = arith.constant 0 : i32
    %c0_i32_0 = arith.constant 0 : i32
    %c0_i32_1 = arith.constant 0 : i32
    return %arg1, %c0_i32, %c0_i32_0 : i32, i32, i32
  }
  func.func @transform_5(%arg0: i32, %arg1: i32) -> (i32, i32, i32) {
    %c0_i32 = arith.constant 0 : i32
    %c0_i32_0 = arith.constant 0 : i32
    %c0_i32_1 = arith.constant 0 : i32
    return %arg1, %c0_i32, %c0_i32_0 : i32, i32, i32
  }
  func.func @transform_6(%arg0: i32, %arg1: i32) -> (i32, i32, i32) {
    %c0_i32 = arith.constant 0 : i32
    %c0_i32_0 = arith.constant 0 : i32
    return %arg1, %arg0, %c0_i32 : i32, i32, i32
  }
}

</mosaic_0001>

<llo_original>
// kernel: _stacked_gru_apply.1
$region0: #{_stacked_gru_apply.1}
  #allocation0 [shape = 'u32[]', space=smem, size = 0x4, offset = 0x4, fixed_abs, tag = 'smem constant byte address 0x4 - core index']
  #allocation1 [shape = 'u32[144,128]{1,0:T(1,128)}', space=vmem, size = 0x12000, scoped, tag = 'internal scratch']
  #allocation2 [shape = 'f32[8,256]{1,0:T(8,128)}', space=vmem, size = 0x2000, scoped, tag = 'scratch operand']
  %s0 = inlined_call_operand.vmem [shape: f32[8,128], index: 0, kind: input, shape index: {}]
  %s1 = inlined_call_operand.vmem [shape: f32[3,8,128], index: 1, kind: input, shape index: {}, may-alias: {1,6}]
  %s2 = inlined_call_operand.hbm [shape: f32[3,256,384], index: 2, kind: input, shape index: {}]
  %s3 = inlined_call_operand.hbm [shape: f32[3,128,128], index: 3, kind: input, shape index: {}]
  %s4 = inlined_call_operand.hbm [shape: f32[3,1,384], index: 4, kind: input, shape index: {}]
  %s5 = inlined_call_operand.hbm [shape: f32[3,1,128], index: 5, kind: input, shape index: {}]
  %s6 = inlined_call_operand.vmem [shape: f32[3,8,128], index: 6, kind: output, shape index: {}, may-alias: {1,6}]
  %s7 = sld [smem:[#allocation0]]
  $region81: #{_stacked_gru_apply.1} parent=0
    _
  %s9 = ssub.s32 1, %s7
  %s10 = scalar_select 0, %s9, %s7
  $region1: #{_stacked_gru_apply.1} parent=0
    #allocation3 [shape = 'u8[786432]{0}', space=vmem, size = 0xc0000, scoped, tag = 'input window, operand 2']
    #allocation4 [shape = 's32[2]{0}', space=sflag, size = 0x8, scoped, tag = 'scoped memory for _stacked_gru_apply.1']
    #allocation5 [shape = 'u8[131072]{0}', space=vmem, size = 0x20000, scoped, tag = 'input window, operand 3']
    #allocation6 [shape = 's32[2]{0}', space=sflag, size = 0x8, scoped, tag = 'scoped memory for _stacked_gru_apply.1']
    #allocation7 [shape = 'u8[3072]{0}', space=vmem, size = 0xc00, scoped, tag = 'input window, operand 4']
    #allocation8 [shape = 'u8[1024]{0}', space=vmem, size = 0x400, scoped, tag = 'input window, operand 5']
    #allocation9 [shape = 's32[2]{0}', space=sflag, size = 0x8, scoped, tag = 'scoped memory for _stacked_gru_apply.1']
    %11 = vsyncpa [#allocation4], 0
    %s12 = scalar_lea.sflag [#allocation4], 1
    %13 = vsyncpa %s12, 0
    %14 = vsyncpa [#allocation6], 0
    %s15 = scalar_lea.sflag [#allocation6], 1
    %16 = vsyncpa %s15, 0
    %17 = vsyncpa [#allocation9], 0
    %s18 = scalar_lea.sflag [#allocation9], 1
    %19 = vsyncpa %s18, 0
    loop: start=0, step=1, limit=5
    $region2: #{_stacked_gru_apply.1} parent=1 // loop_pre_header
      _
    $region3: #{_stacked_gru_apply.1} parent=1 // loop_header
      %s21 = sphi 0, %s25
      %p22 = scmp.ge.s32.totalorder %s21, 5
      %s28 = sphi 0, %s40
      %s29 = sphi 0, %s36
      %s30 = sphi 0, %s28
      %s31 = sphi 0, %s29
      %s32 = sphi 0, %s30
      %s33 = sphi 0, %s31
      %s43 = sphi 0, %s45
      %s46 = sphi 0, %s43
      %s47 = sphi 0, %s46
      %s63 = sphi 0, %s47
      %s71 = sphi 0, %s73
      %s74 = sphi 0, %s71
      %s75 = sphi 0, %s74
      %s91 = sphi 0, %s75
      %s97 = sphi 0, %s99
      %s100 = sphi 0, %s97
      %s101 = sphi 0, %s100
      %s117 = sphi 0, %s101
      %s123 = sphi 0, %s125
      %s126 = sphi 0, %s123
      %s127 = sphi 0, %s126
      %s143 = sphi 0, %s127
      %s149 = sphi 0, %s151
      %s152 = sphi 0, %s149
      %s153 = sphi 0, %s152
      %s169 = sphi 0, %s153
      %s175 = sphi 0, %s177
      %s178 = sphi 0, %s175
      %s179 = sphi 0, %s178
      %s195 = sphi 0, %s179
      %s203 = sphi 0, %s205
      %s206 = sphi 0, %s203
      %s207 = sphi 0, %s206
      %s223 = sphi 0, %s207
    $region4: #{_stacked_gru_apply.1} parent=1 // loop_header_branch
      %24 = sbr.rel (%p22) target = $region8
    $region5: #{_stacked_gru_apply.1} parent=1 // loop_body
      %s26 = ssub.s32 %s21, 1
      %s27 = ssub.s32 %s21, 2
      %s34 = sadd.s32 1, %s29
      %p35 = scmp.ge.s32.totalorder %s34, 3
      %s36 = scalar_select %p35, 0, %s34
      %s37 = sadd.s32 1, %s28
      %s38 = scalar_select %p35, %s37, %s28
      %p39 = scmp.ge.s32.totalorder %s38, 1
      %s40 = scalar_select %p39, 0, %s38
      %s41 = ssub.s32 %s28, %s40
      %p42 = scmp.eq.s32.totalorder %s41, 0
      %s44 = sadd.s32 %s43, 1
      %s45 = scalar_select %p42, %s43, %s44
      %p48 = pneg %p42
      %p49 = scmp.eq.s32.totalorder %s21, 2
      %p50 = por %p48, %p49
      %p51 = scmp.ne.s32.totalorder %s43, %s46
      %p52 = scmp.eq.s32.totalorder %s21, 0
      %p53 = por %p51, %p52
      %p54 = scmp.ne.s32.totalorder %s43, %s46
      %p55 = scmp.eq.s32.totalorder %s26, 2
      %p56 = por %p54, %p55
      %p57 = scmp.ne.s32.totalorder %s46, %s47
      %p58 = scmp.eq.s32.totalorder %s26, 0
      %p59 = por %p57, %p58
      %p60 = scmp.ne.s32.totalorder %s46, %s47
      %p61 = scmp.eq.s32.totalorder %s27, 2
      %p62 = por %p60, %p61
      %p64 = scmp.ne.s32.totalorder %s47, %s63
      %p65 = scmp.eq.s32.totalorder %s27, 0
      %p66 = por %p64, %p65
      %s67 = ssub.s32 %s29, %s36
      %s68 = ssub.s32 %s28, %s40
      %s69 = sor.u32 %s67, %s68
      %p70 = scmp.eq.s32.totalorder %s69, 0
      %s72 = sadd.s32 %s71, 1
      %s73 = scalar_select %p70, %s71, %s72
      %p76 = pneg %p70
      %p77 = scmp.eq.s32.totalorder %s21, 2
      %p78 = por %p76, %p77
      %p79 = scmp.ne.s32.totalorder %s71, %s74
      %p80 = scmp.eq.s32.totalorder %s21, 0
      %p81 = por %p79, %p80
      %p82 = scmp.ne.s32.totalorder %s71, %s74
      %p83 = scmp.eq.s32.totalorder %s26, 2
      %p84 = por %p82, %p83
      %p85 = scmp.ne.s32.totalorder %s74, %s75
      %p86 = scmp.eq.s32.totalorder %s26, 0
      %p87 = por %p85, %p86
      %p88 = scmp.ne.s32.totalorder %s74, %s75
      %p89 = scmp.eq.s32.totalorder %s27, 2
      %p90 = por %p88, %p89
      %p92 = scmp.ne.s32.totalorder %s75, %s91
      %p93 = scmp.eq.s32.totalorder %s27, 0
      %p94 = por %p92, %p93
      %s95 = ssub.s32 %s29, %s36
      %p96 = scmp.eq.s32.totalorder %s95, 0
      %s98 = sadd.s32 %s97, 1
      %s99 = scalar_select %p96, %s97, %s98
      %p102 = pneg %p96
      %p103 = scmp.eq.s32.totalorder %s21, 2
      %p104 = por %p102, %p103
      %p105 = scmp.ne.s32.totalorder %s97, %s100
      %p106 = scmp.eq.s32.totalorder %s21, 0
      %p107 = por %p105, %p106
      %p108 = scmp.ne.s32.totalorder %s97, %s100
      %p109 = scmp.eq.s32.totalorder %s26, 2
      %p110 = por %p108, %p109
      %p111 = scmp.ne.s32.totalorder %s100, %s101
      %p112 = scmp.eq.s32.totalorder %s26, 0
      %p113 = por %p111, %p112
      %p114 = scmp.ne.s32.totalorder %s100, %s101
      %p115 = scmp.eq.s32.totalorder %s27, 2
      %p116 = por %p114, %p115
      %p118 = scmp.ne.s32.totalorder %s101, %s117
      %p119 = scmp.eq.s32.totalorder %s27, 0
      %p120 = por %p118, %p119
      %s121 = ssub.s32 %s29, %s36
      %p122 = scmp.eq.s32.totalorder %s121, 0
      %s124 = sadd.s32 %s123, 1
      %s125 = scalar_select %p122, %s123, %s124
      %p128 = pneg %p122
      %p129 = scmp.eq.s32.totalorder %s21, 2
      %p130 = por %p128, %p129
      %p131 = scmp.ne.s32.totalorder %s123, %s126
      %p132 = scmp.eq.s32.totalorder %s21, 0
      %p133 = por %p131, %p132
      %p134 = scmp.ne.s32.totalorder %s123, %s126
      %p135 = scmp.eq.s32.totalorder %s26, 2
      %p136 = por %p134, %p135
      %p137 = scmp.ne.s32.totalorder %s126, %s127
      %p138 = scmp.eq.s32.totalorder %s26, 0
      %p139 = por %p137, %p138
      %p140 = scmp.ne.s32.totalorder %s126, %s127
      %p141 = scmp.eq.s32.totalorder %s27, 2
      %p142 = por %p140, %p141
      %p144 = scmp.ne.s32.totalorder %s127, %s143
      %p145 = scmp.eq.s32.totalorder %s27, 0
      %p146 = por %p144, %p145
      %s147 = ssub.s32 %s29, %s36
      %p148 = scmp.eq.s32.totalorder %s147, 0
      %s150 = sadd.s32 %s149, 1
      %s151 = scalar_select %p148, %s149, %s150
      %p154 = pneg %p148
      %p155 = scmp.eq.s32.totalorder %s21, 2
      %p156 = por %p154, %p155
      %p157 = scmp.ne.s32.totalorder %s149, %s152
      %p158 = scmp.eq.s32.totalorder %s21, 0
      %p159 = por %p157, %p158
      %p160 = scmp.ne.s32.totalorder %s149, %s152
      %p161 = scmp.eq.s32.totalorder %s26, 2
      %p162 = por %p160, %p161
      %p163 = scmp.ne.s32.totalorder %s152, %s153
      %p164 = scmp.eq.s32.totalorder %s26, 0
      %p165 = por %p163, %p164
      %p166 = scmp.ne.s32.totalorder %s152, %s153
      %p167 = scmp.eq.s32.totalorder %s27, 2
      %p168 = por %p166, %p167
      %p170 = scmp.ne.s32.totalorder %s153, %s169
      %p171 = scmp.eq.s32.totalorder %s27, 0
      %p172 = por %p170, %p171
      %s173 = ssub.s32 %s29, %s36
      %p174 = scmp.eq.s32.totalorder %s173, 0
      %s176 = sadd.s32 %s175, 1
      %s177 = scalar_select %p174, %s175, %s176
      %p180 = pneg %p174
      %p181 = scmp.eq.s32.totalorder %s21, 2
      %p182 = por %p180, %p181
      %p183 = scmp.ne.s32.totalorder %s175, %s178
      %p184 = scmp.eq.s32.totalorder %s21, 0
      %p185 = por %p183, %p184
      %p186 = scmp.ne.s32.totalorder %s175, %s178
      %p187 = scmp.eq.s32.totalorder %s26, 2
      %p188 = por %p186, %p187
      %p189 = scmp.ne.s32.totalorder %s178, %s179
      %p190 = scmp.eq.s32.totalorder %s26, 0
      %p191 = por %p189, %p190
      %p192 = scmp.ne.s32.totalorder %s178, %s179
      %p193 = scmp.eq.s32.totalorder %s27, 2
      %p194 = por %p192, %p193
      %p196 = scmp.ne.s32.totalorder %s179, %s195
      %p197 = scmp.eq.s32.totalorder %s27, 0
      %p198 = por %p196, %p197
      %s199 = ssub.s32 %s29, %s36
      %s200 = ssub.s32 %s28, %s40
      %s201 = sor.u32 %s199, %s200
      %p202 = scmp.eq.s32.totalorder %s201, 0
      %s204 = sadd.s32 %s203, 1
      %s205 = scalar_select %p202, %s203, %s204
      %p208 = pneg %p202
      %p209 = scmp.eq.s32.totalorder %s21, 2
      %p210 = por %p208, %p209
      %p211 = scmp.ne.s32.totalorder %s203, %s206
      %p212 = scmp.eq.s32.totalorder %s21, 0
      %p213 = por %p211, %p212
      %p214 = scmp.ne.s32.totalorder %s203, %s206
      %p215 = scmp.eq.s32.totalorder %s26, 2
      %p216 = por %p214, %p215
      %p217 = scmp.ne.s32.totalorder %s206, %s207
      %p218 = scmp.eq.s32.totalorder %s26, 0
      %p219 = por %p217, %p218
      %p220 = scmp.ne.s32.totalorder %s206, %s207
      %p221 = scmp.eq.s32.totalorder %s27, 2
      %p222 = por %p220, %p221
      %p224 = scmp.ne.s32.totalorder %s207, %s223
      %p225 = scmp.eq.s32.totalorder %s27, 0
      %p226 = por %p224, %p225
      %p227 = scmp.le.s32.totalorder 1, %s21
      %p228 = scmp.lt.s32.totalorder %s21, 4
      %p229 = pnand %p227, %p228
      %p230 = pneg %p229
      // Predicated region
      $region9: #{_stacked_gru_apply.1} parent=5 // pred_check
        _
      $region10: #{_stacked_gru_apply.1} parent=5 // pred_check_branch
        %232 = sbr.rel (%p229) target = $region12
      $region11: #{_stacked_gru_apply.1} parent=5 // pred_region
        %s233 = ssub.s32 %s21, 1
        // Predicated region
        $region13: #{_stacked_gru_apply.1} parent=11 // pred_check
          %p234 = pneg %p59
        $region14: #{_stacked_gru_apply.1} parent=11 // pred_check_branch
          %236 = sbr.rel (%p234) target = $region16
        $region15: #{_stacked_gru_apply.1} parent=11 // pred_region
          %p237 = scmp.lt.s32.totalorder %s30, 0
          %s238 = scalar_select %p237, %s30, 0
          %s239 = smul.addr %s238, 8
          %s240 = scalar_lea.vmem %s0, %s239
        $region16: #{_stacked_gru_apply.1} parent=11 // pred_fallthru
          _
      $region12: #{_stacked_gru_apply.1} parent=5 // pred_fallthru
        _
      %p241 = scmp.lt.s32.totalorder %s21, 3
      // Predicated region
      $region17: #{_stacked_gru_apply.1} parent=5 // pred_check
        %p242 = pneg %p241
      $region18: #{_stacked_gru_apply.1} parent=5 // pred_check_branch
        %244 = sbr.rel (%p242) target = $region20
      $region19: #{_stacked_gru_apply.1} parent=5 // pred_region
        // Predicated region
        $region21: #{_stacked_gru_apply.1} parent=19 // pred_check
          %p245 = pneg %p81
        $region22: #{_stacked_gru_apply.1} parent=19 // pred_check_branch
          %247 = sbr.rel (%p245) target = $region24
        $region23: #{_stacked_gru_apply.1} parent=19 // pred_region
          %p248 = scmp.lt.s32.totalorder %s29, 2
          %s249 = scalar_select %p248, %s29, 2
          %p250 = scmp.lt.s32.totalorder %s28, 0
          %s251 = scalar_select %p250, %s28, 0
          %s252 = sadd.s32 %s251, %s249
          %s253 = smul.addr %s252, 8
          %s254 = scalar_lea.vmem %s1, %s253
        $region24: #{_stacked_gru_apply.1} parent=19 // pred_fallthru
          _
        // Predicated region
        $region25: #{_stacked_gru_apply.1} parent=19 // pred_check
          %p255 = pneg %p107
        $region26: #{_stacked_gru_apply.1} parent=19 // pred_check_branch
          %257 = sbr.rel (%p255) target = $region28
        $region27: #{_stacked_gru_apply.1} parent=19 // pred_region
          %s258 = sand.u32 %s97, 1
          %s259 = scalar_lea.sflag [#allocation4], %s258
          %s260 = sand.u32 %s97, 1
          %s261 = smul.addr %s260, 768
          %s262 = scalar_lea.vmem [#allocation3], %s261
          %s264 = ssub.s32 12288, 12288
          %265 = vsyncadd %s259, %s264
          %s266 = smul.addr %s29, 96
          %s267 = smul.addr %s266, 128
          %s268 = scalar_lea.hbm %s2, %s267
          %s269 = sshll.u32 %s262, 4
          %s270 = int_to_ptr.vmem [resolvable:$true] %s269
          %275 = dma.hbm_to_vmem [thread:$0]  %s268, 12288, %s270, %s259, 384, 384, 24
        $region28: #{_stacked_gru_apply.1} parent=19 // pred_fallthru
          _
        // Predicated region
        $region29: #{_stacked_gru_apply.1} parent=19 // pred_check
          %p276 = pneg %p133
        $region30: #{_stacked_gru_apply.1} parent=19 // pred_check_branch
          %278 = sbr.rel (%p276) target = $region32
        $region31: #{_stacked_gru_apply.1} parent=19 // pred_region
          %s279 = sand.u32 %s21, 1
          %s280 = scalar_lea.sflag [#allocation6], %s279
          %s281 = sand.u32 %s123, 1
          %s282 = smul.addr %s281, 128
          %s283 = scalar_lea.vmem [#allocation5], %s282
          %s285 = ssub.s32 2048, 2048
          %286 = vsyncadd %s280, %s285
          %s287 = smul.addr %s29, 16
          %s288 = smul.addr %s287, 128
          %s289 = scalar_lea.hbm %s3, %s288
          %s290 = sshll.u32 %s283, 4
          %s291 = int_to_ptr.vmem [resolvable:$true] %s290
          %296 = dma.hbm_to_vmem [thread:$0]  %s289, 2048, %s291, %s280, 128, 128, 8
        $region32: #{_stacked_gru_apply.1} parent=19 // pred_fallthru
          _
        // Predicated region
        $region33: #{_stacked_gru_apply.1} parent=19 // pred_check
          %p297 = pneg %p159
        $region34: #{_stacked_gru_apply.1} parent=19 // pred_check_branch
          %299 = sbr.rel (%p297) target = $region36
        $region35: #{_stacked_gru_apply.1} parent=19 // pred_region
          %s300 = sand.u32 %s21, 1
          %s301 = scalar_lea.sflag [#allocation6], %s300
          %s302 = sand.u32 %s149, 1
          %s303 = smul.addr %s302, 3
          %s304 = scalar_lea.vmem [#allocation7], %s303
          %s306 = ssub.s32 48, 48
          %307 = vsyncadd %s301, %s306
          %s308 = smul.addr %s29, 3
          %s309 = smul.addr %s308, 16
          %s310 = scalar_lea.hbm %s4, %s309
          %s312 = sshll.u32 %s304, 4
          %s313 = int_to_ptr.vmem [resolvable:$true] %s312
          %315 = dma.hbm_to_vmem [thread:$0]  %s310, 48, %s313, %s301
        $region36: #{_stacked_gru_apply.1} parent=19 // pred_fallthru
          _
        // Predicated region
        $region37: #{_stacked_gru_apply.1} parent=19 // pred_check
          %p316 = pneg %p185
        $region38: #{_stacked_gru_apply.1} parent=19 // pred_check_branch
          %318 = sbr.rel (%p316) target = $region40
        $region39: #{_stacked_gru_apply.1} parent=19 // pred_region
          %s319 = sand.u32 %s175, 1
          %s320 = scalar_lea.sflag [#allocation9], %s319
          %s321 = sand.u32 %s175, 1
          %s322 = scalar_lea.vmem [#allocation8], %s321
          %s324 = ssub.s32 16, 16
          %325 = vsyncadd %s320, %s324
          %s326 = smul.addr %s29, 16
          %s327 = scalar_lea.hbm %s5, %s326
          %s329 = sshll.u32 %s322, 4
          %s330 = int_to_ptr.vmem [resolvable:$true] %s329
          %332 = dma.hbm_to_vmem [thread:$0]  %s327, 16, %s330, %s320
        $region40: #{_stacked_gru_apply.1} parent=19 // pred_fallthru
          _
      $region20: #{_stacked_gru_apply.1} parent=5 // pred_fallthru
        _
      %p333 = scmp.le.s32.totalorder 1, %s21
      %p334 = scmp.lt.s32.totalorder %s21, 4
      %p335 = pnand %p333, %p334
      %p336 = pneg %p335
      // Predicated region
      $region41: #{_stacked_gru_apply.1} parent=5 // pred_check
        _
      $region42: #{_stacked_gru_apply.1} parent=5 // pred_check_branch
        %338 = sbr.rel (%p335) target = $region44
      $region43: #{_stacked_gru_apply.1} parent=5 // pred_region
        %s339 = ssub.s32 %s21, 1
        %s340 = sand.u32 %s100, 1
        %s341 = scalar_lea.sflag [#allocation4], %s340
        %s342 = sand.u32 %s100, 1
        %s343 = smul.addr %s342, 768
        %s344 = scalar_lea.vmem [#allocation3], %s343
        // Predicated region
        $region45: #{_stacked_gru_apply.1} parent=43 // pred_check
          %p345 = pneg %p113
        $region46: #{_stacked_gru_apply.1} parent=43 // pred_check_branch
          %347 = sbr.rel (%p345) target = $region48
        $region47: #{_stacked_gru_apply.1} parent=43 // pred_region
          %348 = dma.done %s341, 12288
        $region48: #{_stacked_gru_apply.1} parent=43 // pred_fallthru
          _
        %s349 = sand.u32 %s26, 1
        %s350 = scalar_lea.sflag [#allocation6], %s349
        %s351 = sand.u32 %s126, 1
        %s352 = smul.addr %s351, 128
        %s353 = scalar_lea.vmem [#allocation5], %s352
        // Predicated region
        $region49: #{_stacked_gru_apply.1} parent=43 // pred_check
          %p354 = pneg %p139
        $region50: #{_stacked_gru_apply.1} parent=43 // pred_check_branch
          %356 = sbr.rel (%p354) target = $region52
        $region51: #{_stacked_gru_apply.1} parent=43 // pred_region
          %357 = dma.done %s350, 2048
        $region52: #{_stacked_gru_apply.1} parent=43 // pred_fallthru
          _
        %s358 = sand.u32 %s26, 1
        %s359 = scalar_lea.sflag [#allocation6], %s358
        %s360 = sand.u32 %s152, 1
        %s361 = smul.addr %s360, 3
        %s362 = scalar_lea.vmem [#allocation7], %s361
        // Predicated region
        $region53: #{_stacked_gru_apply.1} parent=43 // pred_check
          %p363 = pneg %p165
        $region54: #{_stacked_gru_apply.1} parent=43 // pred_check_branch
          %365 = sbr.rel (%p363) target = $region56
        $region55: #{_stacked_gru_apply.1} parent=43 // pred_region
          %366 = dma.done %s359, 48
        $region56: #{_stacked_gru_apply.1} parent=43 // pred_fallthru
          _
        %s367 = sand.u32 %s178, 1
        %s368 = scalar_lea.sflag [#allocation9], %s367
        %s369 = sand.u32 %s178, 1
        %s370 = scalar_lea.vmem [#allocation8], %s369
        // Predicated region
        $region57: #{_stacked_gru_apply.1} parent=43 // pred_check
          %p371 = pneg %p191
        $region58: #{_stacked_gru_apply.1} parent=43 // pred_check_branch
          %373 = sbr.rel (%p371) target = $region60
        $region59: #{_stacked_gru_apply.1} parent=43 // pred_region
          %374 = dma.done %s368, 16
        $region60: #{_stacked_gru_apply.1} parent=43 // pred_fallthru
          _
        %p375 = scmp.lt.s32.totalorder %s30, 0
        %s376 = scalar_select %p375, %s30, 0
        %s377 = smul.addr %s376, 8
        %s378 = scalar_lea.vmem %s0, %s377
        %p379 = pneg %p59
        %p380 = pneg %p56
        %p381 = scmp.lt.s32.totalorder %s31, 2
        %s382 = scalar_select %p381, %s31, 2
        %p383 = scmp.lt.s32.totalorder %s30, 0
        %s384 = scalar_select %p383, %s30, 0
        %s385 = sadd.s32 %s384, %s382
        %s386 = smul.addr %s385, 8
        %s387 = scalar_lea.vmem %s1, %s386
        %p388 = pneg %p87
        %p389 = pneg %p84
        %s390 = sand.u32 %s100, 1
        %s391 = scalar_lea.sflag [#allocation4], %s390
        %s392 = sand.u32 %s100, 1
        %s393 = smul.addr %s392, 768
        %s394 = scalar_lea.vmem [#allocation3], %s393
        %p395 = pneg %p113
        %p396 = pneg %p110
        %s397 = sand.u32 %s26, 1
        %s398 = scalar_lea.sflag [#allocation6], %s397
        %s399 = sand.u32 %s126, 1
        %s400 = smul.addr %s399, 128
        %s401 = scalar_lea.vmem [#allocation5], %s400
        %p402 = pneg %p139
        %p403 = pneg %p136
        %s404 = sand.u32 %s26, 1
        %s405 = scalar_lea.sflag [#allocation6], %s404
        %s406 = sand.u32 %s152, 1
        %s407 = smul.addr %s406, 3
        %s408 = scalar_lea.vmem [#allocation7], %s407
        %p409 = pneg %p165
        %p410 = pneg %p162
        %s411 = sand.u32 %s178, 1
        %s412 = scalar_lea.sflag [#allocation9], %s411
        %s413 = sand.u32 %s178, 1
        %s414 = scalar_lea.vmem [#allocation8], %s413
        %p415 = pneg %p191
        %p416 = pneg %p188
        %p417 = pneg %p219
        %p418 = pneg %p216
        %p419 = scmp.lt.s32.totalorder %s31, 2
        %s420 = scalar_select %p419, %s31, 2
        %p421 = scmp.lt.s32.totalorder %s30, 0
        %s422 = scalar_select %p421, %s30, 0
        %s423 = sadd.s32 %s422, %s420
        %s424 = smul.addr %s423, 8
        %s425 = scalar_lea.vmem %s6, %s424
        %p426 = scmp.lt.s32.totalorder %s30, 0
        %s427 = scalar_select %p426, %s30, 0
        %s428 = smul.addr %s427, 8
        %s429 = scalar_lea.vmem %s0, %s428
        %p430 = scmp.lt.s32.totalorder %s31, 2
        %s431 = scalar_select %p430, %s31, 2
        %p432 = scmp.lt.s32.totalorder %s30, 0
        %s433 = scalar_select %p432, %s30, 0
        %s434 = sadd.s32 %s433, %s431
        %s435 = smul.addr %s434, 8
        %s436 = scalar_lea.vmem %s1, %s435
        %p437 = scmp.lt.s32.totalorder %s31, 2
        %s438 = scalar_select %p437, %s31, 2
        %p439 = scmp.lt.s32.totalorder %s30, 0
        %s440 = scalar_select %p439, %s30, 0
        %s441 = sadd.s32 %s440, %s438
        %s442 = smul.addr %s441, 8
        %s443 = scalar_lea.vmem %s6, %s442
        %p444 = scmp.eq.s32.totalorder %s31, 0
        // Predicated region
        $region61: #{_stacked_gru_apply.1} parent=43 // pred_check
          %p445 = pneg %p444
        $region62: #{_stacked_gru_apply.1} parent=43 // pred_check_branch
          %447 = sbr.rel (%p445) target = $region64
        $region63: #{_stacked_gru_apply.1} parent=43 // pred_region
          %v448 = vld [vmem:[%s429] sm:$0xff]
          %449 = vst [vmem:[#allocation2] sm:$0xff] %v448
        $region64: #{_stacked_gru_apply.1} parent=43 // pred_fallthru
          _
        %v450 = vld [vmem:[%s436] sm:$0xff]
        %451 = vst [vmem:[#allocation2 + $0x8] sm:$0xff] %v450
        %v452 = vld [vmem:[#allocation2] sm:$0xff]
        %v453 = vld [vmem:[#allocation2 + $0x8] sm:$0xff]
        %v454 = vld [vmem:[%s344] sm:$0xff]
        %v455 = vld [vmem:[%s344 + $0x8] sm:$0xff]
        %v456 = vld [vmem:[%s344 + $0x10] sm:$0xff]
        %v457 = vld [vmem:[%s344 + $0x18] sm:$0xff]
        %v458 = vld [vmem:[%s344 + $0x20] sm:$0xff]
        %v459 = vld [vmem:[%s344 + $0x28] sm:$0xff]
        %v460 = vld [vmem:[%s344 + $0x30] sm:$0xff]
        %v461 = vld [vmem:[%s344 + $0x38] sm:$0xff]
        %v462 = vld [vmem:[%s344 + $0x40] sm:$0xff]
        %v463 = vld [vmem:[%s344 + $0x48] sm:$0xff]
        %v464 = vld [vmem:[%s344 + $0x50] sm:$0xff]
        %v465 = vld [vmem:[%s344 + $0x58] sm:$0xff]
        %v466 = vld [vmem:[%s344 + $0x60] sm:$0xff]
        %v467 = vld [vmem:[%s344 + $0x68] sm:$0xff]
        %v468 = vld [vmem:[%s344 + $0x70] sm:$0xff]
        %v469 = vld [vmem:[%s344 + $0x78] sm:$0xff]
        %v470 = vld [vmem:[%s344 + $0x80] sm:$0xff]
        %v471 = vld [vmem:[%s344 + $0x88] sm:$0xff]
        %v472 = vld [vmem:[%s344 + $0x90] sm:$0xff]
        %v473 = vld [vmem:[%s344 + $0x98] sm:$0xff]
        %v474 = vld [vmem:[%s344 + $0xa0] sm:$0xff]
        %v475 = vld [vmem:[%s344 + $0xa8] sm:$0xff]
        %v476 = vld [vmem:[%s344 + $0xb0] sm:$0xff]
        %v477 = vld [vmem:[%s344 + $0xb8] sm:$0xff]
        %v478 = vld [vmem:[%s344 + $0xc0] sm:$0xff]
        %v479 = vld [vmem:[%s344 + $0xc8] sm:$0xff]
        %v480 = vld [vmem:[%s344 + $0xd0] sm:$0xff]
        %v481 = vld [vmem:[%s344 + $0xd8] sm:$0xff]
        %v482 = vld [vmem:[%s344 + $0xe0] sm:$0xff]
        %v483 = vld [vmem:[%s344 + $0xe8] sm:$0xff]
        %v484 = vld [vmem:[%s344 + $0xf0] sm:$0xff]
        %v485 = vld [vmem:[%s344 + $0xf8] sm:$0xff]
        %v486 = vld [vmem:[%s344 + $0x100] sm:$0xff]
        %v487 = vld [vmem:[%s344 + $0x108] sm:$0xff]
        %v488 = vld [vmem:[%s344 + $0x110] sm:$0xff]
        %v489 = vld [vmem:[%s344 + $0x118] sm:$0xff]
        %v490 = vld [vmem:[%s344 + $0x120] sm:$0xff]
        %v491 = vld [vmem:[%s344 + $0x128] sm:$0xff]
        %v492 = vld [vmem:[%s344 + $0x130] sm:$0xff]
        %v493 = vld [vmem:[%s344 + $0x138] sm:$0xff]
        %v494 = vld [vmem:[%s344 + $0x140] sm:$0xff]
        %v495 = vld [vmem:[%s344 + $0x148] sm:$0xff]
        %v496 = vld [vmem:[%s344 + $0x150] sm:$0xff]
        %v497 = vld [vmem:[%s344 + $0x158] sm:$0xff]
        %v498 = vld [vmem:[%s344 + $0x160] sm:$0xff]
        %v499 = vld [vmem:[%s344 + $0x168] sm:$0xff]
        %v500 = vld [vmem:[%s344 + $0x170] sm:$0xff]
        %v501 = vld [vmem:[%s344 + $0x178] sm:$0xff]
        %v502 = vld [vmem:[%s344 + $0x180] sm:$0xff]
        %v503 = vld [vmem:[%s344 + $0x188] sm:$0xff]
        %v504 = vld [vmem:[%s344 + $0x190] sm:$0xff]
        %v505 = vld [vmem:[%s344 + $0x198] sm:$0xff]
        %v506 = vld [vmem:[%s344 + $0x1a0] sm:$0xff]
        %v507 = vld [vmem:[%s344 + $0x1a8] sm:$0xff]
        %v508 = vld [vmem:[%s344 + $0x1b0] sm:$0xff]
        %v509 = vld [vmem:[%s344 + $0x1b8] sm:$0xff]
        %v510 = vld [vmem:[%s344 + $0x1c0] sm:$0xff]
        %v511 = vld [vmem:[%s344 + $0x1c8] sm:$0xff]
        %v512 = vld [vmem:[%s344 + $0x1d0] sm:$0xff]
        %v513 = vld [vmem:[%s344 + $0x1d8] sm:$0xff]
        %v514 = vld [vmem:[%s344 + $0x1e0] sm:$0xff]
        %v515 = vld [vmem:[%s344 + $0x1e8] sm:$0xff]
        %v516 = vld [vmem:[%s344 + $0x1f0] sm:$0xff]
        %v517 = vld [vmem:[%s344 + $0x1f8] sm:$0xff]
        %v518 = vld [vmem:[%s344 + $0x200] sm:$0xff]
        %v519 = vld [vmem:[%s344 + $0x208] sm:$0xff]
        %v520 = vld [vmem:[%s344 + $0x210] sm:$0xff]
        %v521 = vld [vmem:[%s344 + $0x218] sm:$0xff]
        %v522 = vld [vmem:[%s344 + $0x220] sm:$0xff]
        %v523 = vld [vmem:[%s344 + $0x228] sm:$0xff]
        %v524 = vld [vmem:[%s344 + $0x230] sm:$0xff]
        %v525 = vld [vmem:[%s344 + $0x238] sm:$0xff]
        %v526 = vld [vmem:[%s344 + $0x240] sm:$0xff]
        %v527 = vld [vmem:[%s344 + $0x248] sm:$0xff]
        %v528 = vld [vmem:[%s344 + $0x250] sm:$0xff]
        %v529 = vld [vmem:[%s344 + $0x258] sm:$0xff]
        %v530 = vld [vmem:[%s344 + $0x260] sm:$0xff]
        %v531 = vld [vmem:[%s344 + $0x268] sm:$0xff]
        %v532 = vld [vmem:[%s344 + $0x270] sm:$0xff]
        %v533 = vld [vmem:[%s344 + $0x278] sm:$0xff]
        %v534 = vld [vmem:[%s344 + $0x280] sm:$0xff]
        %v535 = vld [vmem:[%s344 + $0x288] sm:$0xff]
        %v536 = vld [vmem:[%s344 + $0x290] sm:$0xff]
        %v537 = vld [vmem:[%s344 + $0x298] sm:$0xff]
        %v538 = vld [vmem:[%s344 + $0x2a0] sm:$0xff]
        %v539 = vld [vmem:[%s344 + $0x2a8] sm:$0xff]
        %v540 = vld [vmem:[%s344 + $0x2b0] sm:$0xff]
        %v541 = vld [vmem:[%s344 + $0x2b8] sm:$0xff]
        %v542 = vld [vmem:[%s344 + $0x2c0] sm:$0xff]
        %v543 = vld [vmem:[%s344 + $0x2c8] sm:$0xff]
        %v544 = vld [vmem:[%s344 + $0x2d0] sm:$0xff]
        %v545 = vld [vmem:[%s344 + $0x2d8] sm:$0xff]
        %v546 = vld [vmem:[%s344 + $0x2e0] sm:$0xff]
        %v547 = vld [vmem:[%s344 + $0x2e8] sm:$0xff]
        %v548 = vld [vmem:[%s344 + $0x2f0] sm:$0xff]
        %v549 = vld [vmem:[%s344 + $0x2f8] sm:$0xff]
        %v550 = vld [vmem:[%s362] sm:$0x7]
        %v552 = vlaneseq
        %v553 = vshrl.u32 %v552, 7
        %v554 = vsub.s32 0, %v553
        %v555 = vrot.slane %v550, %v554
        %v556 = vlaneseq
        %v557 = vshrl.u32 %v556, 7
        %v558 = vsub.s32 1, %v557
        %v559 = vrot.slane %v550, %v558
        %v560 = vlaneseq
        %v561 = vshrl.u32 %v560, 7
        %v562 = vsub.s32 2, %v561
        %v563 = vrot.slane %v550, %v562
        %567 = vmatprep.subr.mxu0 %v455
        %568 = vmatpush1.msra.mxu0 %v454
        %569 = vmatprep.subr.mxu0 %v458
        %570 = vmatpush1.msra.mxu0 %v457
        %571 = vmatprep.subr.mxu0 %v461
        %572 = vmatpush1.msra.mxu0 %v460
        %573 = vmatprep.subr.mxu0 %v464
        %574 = vmatpush1.msra.mxu0 %v463
        %575 = vmatprep.subr.mxu0 %v467
        %576 = vmatpush1.msra.mxu0 %v466
        %577 = vmatprep.subr.mxu0 %v470
        %578 = vmatpush1.msra.mxu0 %v469
        %579 = vmatprep.subr.mxu0 %v473
        %580 = vmatpush1.msra.mxu0 %v472
        %581 = vmatprep.subr.mxu0 %v476
        %582 = vmatpush1.msra.mxu0 %v475
        %583 = vmatprep.subr.mxu0 %v479
        %584 = vmatpush1.msra.mxu0 %v478
        %585 = vmatprep.subr.mxu0 %v482
        %586 = vmatpush1.msra.mxu0 %v481
        %587 = vmatprep.subr.mxu0 %v485
        %588 = vmatpush1.msra.mxu0 %v484
        %589 = vmatprep.subr.mxu0 %v488
        %590 = vmatpush1.msra.mxu0 %v487
        %591 = vmatprep.subr.mxu0 %v491
        %592 = vmatpush1.msra.mxu0 %v490
        %593 = vmatprep.subr.mxu0 %v494
        %594 = vmatpush1.msra.mxu0 %v493
        %595 = vmatprep.subr.mxu0 %v497
        %596 = vmatpush1.msra.mxu0 %v496
        %597 = vmatprep.subr.mxu0 %v500
        %598 = vmatpush1.msra.mxu0 %v499
        %599 = vmatprep.subr.mxu0 %v503
        %600 = vmatpush1.msra.mxu0 %v502
        %601 = vmatprep.subr.mxu0 %v506
        %602 = vmatpush1.msra.mxu0 %v505
        %603 = vmatprep.subr.mxu0 %v509
        %604 = vmatpush1.msra.mxu0 %v508
        %605 = vmatprep.subr.mxu0 %v512
        %606 = vmatpush1.msra.mxu0 %v511
        %607 = vmatprep.subr.mxu0 %v515
        %608 = vmatpush1.msra.mxu0 %v514
        %609 = vmatprep.subr.mxu0 %v518
        %610 = vmatpush1.msra.mxu0 %v517
        %611 = vmatprep.subr.mxu0 %v521
        %612 = vmatpush1.msra.mxu0 %v520
        %613 = vmatprep.subr.mxu0 %v524
        %614 = vmatpush1.msra.mxu0 %v523
        %615 = vmatprep.subr.mxu0 %v527
        %616 = vmatpush1.msra.mxu0 %v526
        %617 = vmatprep.subr.mxu0 %v530
        %618 = vmatpush1.msra.mxu0 %v529
        %619 = vmatprep.subr.mxu0 %v533
        %620 = vmatpush1.msra.mxu0 %v532
        %621 = vmatprep.subr.mxu0 %v536
        %622 = vmatpush1.msra.mxu0 %v535
        %623 = vmatprep.subr.mxu0 %v539
        %624 = vmatpush1.msra.mxu0 %v538
        %625 = vmatprep.subr.mxu0 %v542
        %626 = vmatpush1.msra.mxu0 %v541
        %627 = vmatprep.subr.mxu0 %v545
        %628 = vmatpush1.msra.mxu0 %v544
        %629 = vmatprep.subr.mxu0 %v548
        %630 = vmatpush1.msra.mxu0 %v547
        %631 = vmatprep.mubr.f32.mxu0 %v453
        %632 = vmatmul.mubr.f32.gmra.mrb[0].mxu0 %v452
        %v633 = vpop.f32.mrb[0].mxu0
        %v634 = vadd.f32 %v555, %v633
        %v635 = vpop.f32.mrb[0].mxu0
        %v636 = vadd.f32 %v559, %v635
        %637 = vdwg.mxu0
        %638 = vmatprep.subr.mxu0 0.0
        %639 = vmatpush1.msra.mxu0 %v456
        %640 = vmatprep.subr.mxu0 0.0
        %641 = vmatpush1.msra.mxu0 %v459
        %642 = vmatprep.subr.mxu0 0.0
        %643 = vmatpush1.msra.mxu0 %v462
        %644 = vmatprep.subr.mxu0 0.0
        %645 = vmatpush1.msra.mxu0 %v465
        %646 = vmatprep.subr.mxu0 0.0
        %647 = vmatpush1.msra.mxu0 %v468
        %648 = vmatprep.subr.mxu0 0.0
        %649 = vmatpush1.msra.mxu0 %v471
        %650 = vmatprep.subr.mxu0 0.0
        %651 = vmatpush1.msra.mxu0 %v474
        %652 = vmatprep.subr.mxu0 0.0
        %653 = vmatpush1.msra.mxu0 %v477
        %654 = vmatprep.subr.mxu0 0.0
        %655 = vmatpush1.msra.mxu0 %v480
        %656 = vmatprep.subr.mxu0 0.0
        %657 = vmatpush1.msra.mxu0 %v483
        %658 = vmatprep.subr.mxu0 0.0
        %659 = vmatpush1.msra.mxu0 %v486
        %660 = vmatprep.subr.mxu0 0.0
        %661 = vmatpush1.msra.mxu0 %v489
        %662 = vmatprep.subr.mxu0 0.0
        %663 = vmatpush1.msra.mxu0 %v492
        %664 = vmatprep.subr.mxu0 0.0
        %665 = vmatpush1.msra.mxu0 %v495
        %666 = vmatprep.subr.mxu0 0.0
        %667 = vmatpush1.msra.mxu0 %v498
        %668 = vmatprep.subr.mxu0 0.0
        %669 = vmatpush1.msra.mxu0 %v501
        %670 = vmatprep.subr.mxu0 0.0
        %671 = vmatpush1.msra.mxu0 %v504
        %672 = vmatprep.subr.mxu0 0.0
        %673 = vmatpush1.msra.mxu0 %v507
        %674 = vmatprep.subr.mxu0 0.0
        %675 = vmatpush1.msra.mxu0 %v510
        %676 = vmatprep.subr.mxu0 0.0
        %677 = vmatpush1.msra.mxu0 %v513
        %678 = vmatprep.subr.mxu0 0.0
        %679 = vmatpush1.msra.mxu0 %v516
        %680 = vmatprep.subr.mxu0 0.0
        %681 = vmatpush1.msra.mxu0 %v519
        %682 = vmatprep.subr.mxu0 0.0
        %683 = vmatpush1.msra.mxu0 %v522
        %684 = vmatprep.subr.mxu0 0.0
        %685 = vmatpush1.msra.mxu0 %v525
        %686 = vmatprep.subr.mxu0 0.0
        %687 = vmatpush1.msra.mxu0 %v528
        %688 = vmatprep.subr.mxu0 0.0
        %689 = vmatpush1.msra.mxu0 %v531
        %690 = vmatprep.subr.mxu0 0.0
        %691 = vmatpush1.msra.mxu0 %v534
        %692 = vmatprep.subr.mxu0 0.0
        %693 = vmatpush1.msra.mxu0 %v537
        %694 = vmatprep.subr.mxu0 0.0
        %695 = vmatpush1.msra.mxu0 %v540
        %696 = vmatprep.subr.mxu0 0.0
        %697 = vmatpush1.msra.mxu0 %v543
        %698 = vmatprep.subr.mxu0 0.0
        %699 = vmatpush1.msra.mxu0 %v546
        %700 = vmatprep.subr.mxu0 0.0
        %701 = vmatpush1.msra.mxu0 %v549
        %702 = vmatprep.mubr.f32.mxu0 %v453
        %703 = vmatmul.mubr.f32.gmra.mrb[0].mxu0 %v452
        %v704 = vpop.f32.mrb[0].mxu0
        %v705 = vadd.f32 %v563, %v704
        %v706 = vpop.f32.mrb[0].mxu0
        %707 = vdwg.mxu0
        %v708 = vld [vmem:[%s353] sm:$0xff]
        %v709 = vld [vmem:[%s353 + $0x8] sm:$0xff]
        %v710 = vld [vmem:[%s353 + $0x10] sm:$0xff]
        %v711 = vld [vmem:[%s353 + $0x18] sm:$0xff]
        %v712 = vld [vmem:[%s353 + $0x20] sm:$0xff]
        %v713 = vld [vmem:[%s353 + $0x28] sm:$0xff]
        %v714 = vld [vmem:[%s353 + $0x30] sm:$0xff]
        %v715 = vld [vmem:[%s353 + $0x38] sm:$0xff]
        %v716 = vld [vmem:[%s353 + $0x40] sm:$0xff]
        %v717 = vld [vmem:[%s353 + $0x48] sm:$0xff]
        %v718 = vld [vmem:[%s353 + $0x50] sm:$0xff]
        %v719 = vld [vmem:[%s353 + $0x58] sm:$0xff]
        %v720 = vld [vmem:[%s353 + $0x60] sm:$0xff]
        %v721 = vld [vmem:[%s353 + $0x68] sm:$0xff]
        %v722 = vld [vmem:[%s353 + $0x70] sm:$0xff]
        %v723 = vld [vmem:[%s353 + $0x78] sm:$0xff]
        %v724 = vld [vmem:[%s370] sm:$0x1]
        %v726 = vlaneseq
        %v727 = vshrl.u32 %v726, 7
        %v728 = vsub.s32 0, %v727
        %v729 = vrot.slane %v724, %v728
        %731 = vmatprep.subr.mxu0 0.0
        %732 = vmatpush1.msra.mxu0 %v708
        %733 = vmatprep.subr.mxu0 0.0
        %734 = vmatpush1.msra.mxu0 %v709
        %735 = vmatprep.subr.mxu0 0.0
        %736 = vmatpush1.msra.mxu0 %v710
        %737 = vmatprep.subr.mxu0 0.0
        %738 = vmatpush1.msra.mxu0 %v711
        %739 = vmatprep.subr.mxu0 0.0
        %740 = vmatpush1.msra.mxu0 %v712
        %741 = vmatprep.subr.mxu0 0.0
        %742 = vmatpush1.msra.mxu0 %v713
        %743 = vmatprep.subr.mxu0 0.0
        %744 = vmatpush1.msra.mxu0 %v714
        %745 = vmatprep.subr.mxu0 0.0
        %746 = vmatpush1.msra.mxu0 %v715
        %747 = vmatprep.subr.mxu0 0.0
        %748 = vmatpush1.msra.mxu0 %v716
        %749 = vmatprep.subr.mxu0 0.0
        %750 = vmatpush1.msra.mxu0 %v717
        %751 = vmatprep.subr.mxu0 0.0
        %752 = vmatpush1.msra.mxu0 %v718
        %753 = vmatprep.subr.mxu0 0.0
        %754 = vmatpush1.msra.mxu0 %v719
        %755 = vmatprep.subr.mxu0 0.0
        %756 = vmatpush1.msra.mxu0 %v720
        %757 = vmatprep.subr.mxu0 0.0
        %758 = vmatpush1.msra.mxu0 %v721
        %759 = vmatprep.subr.mxu0 0.0
        %760 = vmatpush1.msra.mxu0 %v722
        %761 = vmatprep.subr.mxu0 0.0
        %762 = vmatpush1.msra.mxu0 %v723
        %763 = vmatprep.subr.mxu0 0.0
        %764 = vmatpush1.msra.mxu0 0.0
        %765 = vmatprep.subr.mxu0 0.0
        %766 = vmatpush1.msra.mxu0 0.0
        %767 = vmatprep.subr.mxu0 0.0
        %768 = vmatpush1.msra.mxu0 0.0
        %769 = vmatprep.subr.mxu0 0.0
        %770 = vmatpush1.msra.mxu0 0.0
        %771 = vmatprep.subr.mxu0 0.0
        %772 = vmatpush1.msra.mxu0 0.0
        %773 = vmatprep.subr.mxu0 0.0
        %774 = vmatpush1.msra.mxu0 0.0
        %775 = vmatprep.subr.mxu0 0.0
        %776 = vmatpush1.msra.mxu0 0.0
        %777 = vmatprep.subr.mxu0 0.0
        %778 = vmatpush1.msra.mxu0 0.0
        %779 = vmatprep.subr.mxu0 0.0
        %780 = vmatpush1.msra.mxu0 0.0
        %781 = vmatprep.subr.mxu0 0.0
        %782 = vmatpush1.msra.mxu0 0.0
        %783 = vmatprep.subr.mxu0 0.0
        %784 = vmatpush1.msra.mxu0 0.0
        %785 = vmatprep.subr.mxu0 0.0
        %786 = vmatpush1.msra.mxu0 0.0
        %787 = vmatprep.subr.mxu0 0.0
        %788 = vmatpush1.msra.mxu0 0.0
        %789 = vmatprep.subr.mxu0 0.0
        %790 = vmatpush1.msra.mxu0 0.0
        %791 = vmatprep.subr.mxu0 0.0
        %792 = vmatpush1.msra.mxu0 0.0
        %793 = vmatprep.subr.mxu0 0.0
        %794 = vmatpush1.msra.mxu0 0.0
        %795 = vmatprep.mubr.f32.mxu0 0.0
        %796 = vmatmul.mubr.f32.gmra.mrb[0].mxu0 %v450
        %v797 = vpop.f32.mrb[0].mxu0
        %v798 = vadd.f32 %v729, %v797
        %v799 = vpop.f32.mrb[0].mxu0
        %800 = vdwg.mxu0
        %v801 = vxor.u32 %v634, 2147483648
        %v802 = vmul.f32 %v801, 1.442695
        %v803 = vpow.pop %v802
        %v804 = vadd.f32 %v803, 1.0
        %v805 = vrcp.pop %v804
        %v806 = vmul.f32 1.0, %v805
        %v807 = vxor.u32 %v636, 2147483648
        %v808 = vmul.f32 %v807, 1.442695
        %v809 = vpow.pop %v808
        %v810 = vadd.f32 %v809, 1.0
        %v811 = vrcp.pop %v810
        %v812 = vmul.f32 1.0, %v811
        %v813 = vmul.f32 %v806, %v798
        %v814 = vadd.f32 %v705, %v813
        %v815 = vtanh.pop %v814
        %v816 = vsub.f32 1.0, %v812
        %v817 = vmul.f32 %v816, %v815
        %v818 = vmul.f32 %v812, %v450
        %v819 = vadd.f32 %v817, %v818
        %820 = vst [vmem:[%s443] sm:$0xff] %v819
        %s821 = sadd.s32 %s31, 1
        %p822 = scmp.lt.s32.totalorder %s821, 3
        // Predicated region
        $region65: #{_stacked_gru_apply.1} parent=43 // pred_check
          %p823 = pneg %p822
        $region66: #{_stacked_gru_apply.1} parent=43 // pred_check_branch
          %825 = sbr.rel (%p823) target = $region68
        $region67: #{_stacked_gru_apply.1} parent=43 // pred_region
          %826 = vst [vmem:[#allocation2] sm:$0xff] %v819
        $region68: #{_stacked_gru_apply.1} parent=43 // pred_fallthru
          _
        %p827 = scmp.lt.s32.totalorder %s31, 2
        %s828 = scalar_select %p827, %s31, 2
        %p829 = scmp.lt.s32.totalorder %s30, 0
        %s830 = scalar_select %p829, %s30, 0
        %s831 = sadd.s32 %s830, %s828
        %s832 = smul.addr %s831, 8
        %s833 = scalar_lea.vmem %s6, %s832
        // Predicated region
        $region69: #{_stacked_gru_apply.1} parent=43 // pred_check
          %p834 = pneg %p216
        $region70: #{_stacked_gru_apply.1} parent=43 // pred_check_branch
          %836 = sbr.rel (%p834) target = $region72
        $region71: #{_stacked_gru_apply.1} parent=43 // pred_region
          _
        $region72: #{_stacked_gru_apply.1} parent=43 // pred_fallthru
          _
      $region44: #{_stacked_gru_apply.1} parent=5 // pred_fallthru
        _
      %p837 = scmp.le.s32.totalorder 2, %s21
      // Predicated region
      $region73: #{_stacked_gru_apply.1} parent=5 // pred_check
        %p838 = pneg %p837
      $region74: #{_stacked_gru_apply.1} parent=5 // pred_check_branch
        %840 = sbr.rel (%p838) target = $region76
      $region75: #{_stacked_gru_apply.1} parent=5 // pred_region
        %s841 = ssub.s32 %s21, 2
        // Predicated region
        $region77: #{_stacked_gru_apply.1} parent=75 // pred_check
          %p842 = pneg %p222
        $region78: #{_stacked_gru_apply.1} parent=75 // pred_check_branch
          %844 = sbr.rel (%p842) target = $region80
        $region79: #{_stacked_gru_apply.1} parent=75 // pred_region
          %p845 = scmp.lt.s32.totalorder %s33, 2
          %s846 = scalar_select %p845, %s33, 2
          %p847 = scmp.lt.s32.totalorder %s32, 0
          %s848 = scalar_select %p847, %s32, 0
          %s849 = sadd.s32 %s848, %s846
          %s850 = smul.addr %s849, 8
          %s851 = scalar_lea.vmem %s6, %s850
        $region80: #{_stacked_gru_apply.1} parent=75 // pred_fallthru
          _
      $region76: #{_stacked_gru_apply.1} parent=5 // pred_fallthru
        _
    $region6: #{_stacked_gru_apply.1} parent=1 // loop_footer
      %s25 = sadd.s32 1, %s21
    $region7: #{_stacked_gru_apply.1} parent=1 // loop_footer_branch
      %20 = sbr.rel target = $region3
    $region8: #{_stacked_gru_apply.1} parent=1 // loop_exit
      _
    %852 = vsyncpa [#allocation4], 1
    %s853 = scalar_lea.sflag [#allocation4], 1
    %854 = vsyncpa %s853, 1
    %855 = vsyncpa [#allocation6], 1
    %s856 = scalar_lea.sflag [#allocation6], 1
    %857 = vsyncpa %s856, 1
    %858 = vsyncpa [#allocation9], 1
    %s859 = scalar_lea.sflag [#allocation9], 1
    %860 = vsyncpa %s859, 1

</llo_original>
